<compile_context>
chip_gen: v7x
topology: tpu7x:2x2x1
jax: 0.10.0
libtpu: 0.0.40
codegen_flags: <defaults>
</compile_context>

<pallas_src>
import jax
import jax.numpy as jnp
from jax.experimental import pallas as pl
from jax.experimental.pallas import tpu as pltpu

TILE_M = 128   # node-row tile (output rows per grid step)
TILE_K = 128   # Ahat column tile (reduction axis)
LANES = 128    # class dim padded to one full lane group


def _round_up(v, m):
    return ((v + m - 1) // m) * m


# --------------------------------------------------------------------------
# Kernel 1: feature transform  XW = X @ W1   (rows tiled, no reduction axis)
# --------------------------------------------------------------------------
def xw_kernel(x_ref, w_ref, xw_ref):
    xw_ref[...] = jnp.dot(
        x_ref[...], w_ref[...], preferred_element_type=jnp.float32
    ).astype(xw_ref.dtype)


# --------------------------------------------------------------------------
# Kernel 2 (GCN layer 1): h = relu(Ahat @ XW + b1)
#   grid = (row tiles, K tiles); f32 VMEM accumulator; bias + ReLU only on the
#   last K step.
# --------------------------------------------------------------------------
def prop_relu_kernel(ahat_ref, z_ref, b_ref, h_ref, acc_ref):
    k = pl.program_id(1)

    @pl.when(k == 0)
    def _():
        acc_ref[...] = jnp.zeros_like(acc_ref)

    acc_ref[...] += jnp.dot(
        ahat_ref[...], z_ref[...], preferred_element_type=jnp.float32
    )

    @pl.when(k == pl.num_programs(1) - 1)
    def _():
        h = jnp.maximum(acc_ref[...] + b_ref[...], 0.0)
        # TODO(synk): training-mode dropout (p=0.5) would use pltpu.prng_seed +
        # pltpu.prng_random_bits here; eval mode (identity) is implemented.
        h_ref[...] = h.astype(h_ref.dtype)


# --------------------------------------------------------------------------
# Kernel 3 (GCN layer 2): out = log_softmax((Ahat @ h) @ W2 + b2)
#   Same tiled Ahat sweep; the tiny [H, C_pad] projection, bias and log_softmax
#   run in the finalize epilogue. Padded class lanes have bias -1e30 -> exp()==0.
# --------------------------------------------------------------------------
def prop_proj_logsoftmax_kernel(ahat_ref, h_ref, w2_ref, b2_ref, out_ref, acc_ref):
    k = pl.program_id(1)

    @pl.when(k == 0)
    def _():
        acc_ref[...] = jnp.zeros_like(acc_ref)

    acc_ref[...] += jnp.dot(
        ahat_ref[...], h_ref[...], preferred_element_type=jnp.float32
    )

    @pl.when(k == pl.num_programs(1) - 1)
    def _():
        o = jnp.dot(
            acc_ref[...], w2_ref[...], preferred_element_type=jnp.float32
        ) + b2_ref[...]
        m = jnp.max(o, axis=-1, keepdims=True)
        z = o - m
        lse = jnp.log(jnp.sum(jnp.exp(z), axis=-1, keepdims=True))
        out_ref[...] = z - lse


# --------------------------------------------------------------------------
# Wrapper: pad to tile multiples, cast streaming operands to bf16, run the
# three tiled pallas_calls, slice back to [N, n_cls].
# --------------------------------------------------------------------------
def gnn_forward(ahat, x, w1, b1, w2, b2):
    n, fin = x.shape
    hid = w1.shape[1]
    n_cls = w2.shape[1]

    n_pad = _round_up(max(n, TILE_M), TILE_M)   # TILE_M == TILE_K
    c_pad = _round_up(n_cls, LANES)

    # bf16 streaming operands (f32 accumulation inside the kernels).
    ahat_p = jnp.zeros((n_pad, n_pad), jnp.bfloat16).at[:n, :n].set(
        ahat.astype(jnp.bfloat16))
    x_p = jnp.zeros((n_pad, fin), jnp.bfloat16).at[:n, :].set(
        x.astype(jnp.bfloat16))
    w1_b = w1.astype(jnp.bfloat16)
    b1_f = b1.astype(jnp.float32).reshape(1, hid)

    # Class dim padded to a full lane group; padded logits forced to -1e30.
    w2_p = jnp.zeros((hid, c_pad), jnp.float32).at[:, :n_cls].set(
        w2.astype(jnp.float32))
    b2_p = jnp.full((1, c_pad), -1e30, jnp.float32).at[:, :n_cls].set(
        b2.astype(jnp.float32).reshape(1, n_cls))

    grid_rows = n_pad // TILE_M
    grid_k = n_pad // TILE_K

    # --- X @ W1 (row-tiled) ---
    xw = pl.pallas_call(
        xw_kernel,
        out_shape=jax.ShapeDtypeStruct((n_pad, hid), jnp.bfloat16),
        grid=(grid_rows,),
        in_specs=[
            pl.BlockSpec((TILE_M, fin), lambda i: (i, 0)),
            pl.BlockSpec((fin, hid), lambda i: (0, 0)),
        ],
        out_specs=pl.BlockSpec((TILE_M, hid), lambda i: (i, 0)),
        compiler_params=pltpu.CompilerParams(
            dimension_semantics=("parallel",)),
    )(x_p, w1_b)

    # --- layer 1: h = relu(Ahat @ XW + b1) ---
    h = pl.pallas_call(
        prop_relu_kernel,
        out_shape=jax.ShapeDtypeStruct((n_pad, hid), jnp.bfloat16),
        grid=(grid_rows, grid_k),
        in_specs=[
            pl.BlockSpec((TILE_M, TILE_K), lambda i, k: (i, k)),
            pl.BlockSpec((TILE_K, hid), lambda i, k: (k, 0)),
            pl.BlockSpec((1, hid), lambda i, k: (0, 0)),
        ],
        out_specs=pl.BlockSpec((TILE_M, hid), lambda i, k: (i, 0)),
        scratch_shapes=[pltpu.VMEM((TILE_M, hid), jnp.float32)],
        compiler_params=pltpu.CompilerParams(
            dimension_semantics=("parallel", "arbitrary")),
        cost_estimate=pl.CostEstimate(
            flops=2 * n_pad * n_pad * hid,
            transcendentals=0,
            bytes_accessed=2 * n_pad * n_pad
            + 2 * n_pad * hid * (grid_rows + 1)),
    )(ahat_p, xw, b1_f)

    # --- layer 2: out = log_softmax((Ahat @ h) @ W2 + b2) ---
    out_p = pl.pallas_call(
        prop_proj_logsoftmax_kernel,
        out_shape=jax.ShapeDtypeStruct((n_pad, c_pad), jnp.float32),
        grid=(grid_rows, grid_k),
        in_specs=[
            pl.BlockSpec((TILE_M, TILE_K), lambda i, k: (i, k)),
            pl.BlockSpec((TILE_K, hid), lambda i, k: (k, 0)),
            pl.BlockSpec((hid, c_pad), lambda i, k: (0, 0)),
            pl.BlockSpec((1, c_pad), lambda i, k: (0, 0)),
        ],
        out_specs=pl.BlockSpec((TILE_M, c_pad), lambda i, k: (i, 0)),
        scratch_shapes=[pltpu.VMEM((TILE_M, hid), jnp.float32)],
        compiler_params=pltpu.CompilerParams(
            dimension_semantics=("parallel", "arbitrary")),
        cost_estimate=pl.CostEstimate(
            flops=2 * n_pad * n_pad * hid + 2 * n_pad * hid * c_pad,
            transcendentals=2 * n_pad * c_pad,
            bytes_accessed=2 * n_pad * n_pad + 2 * n_pad * hid * grid_rows
            + 4 * n_pad * c_pad),
    )(ahat_p, h, w2_p, b2_p)

    return out_p[:n, :n_cls]


# --------------------------------------------------------------------------
# Plain-JAX glue: GCN-normalized dense adjacency  D^{-1/2} (A + I) D^{-1/2}.
# --------------------------------------------------------------------------
def build_ahat(edge_index, num_nodes):
    src = edge_index[0]
    dst = edge_index[1]
    loop = jnp.arange(num_nodes, dtype=edge_index.dtype)
    src = jnp.concatenate([src, loop])
    dst = jnp.concatenate([dst, loop])
    a = jnp.zeros((num_nodes, num_nodes), jnp.float32).at[dst, src].add(1.0)
    deg = jnp.sum(a, axis=1)
    dinv = jnp.where(deg > 0, 1.0 / jnp.sqrt(deg), 0.0)
    return dinv[:, None] * a * dinv[None, :]


def glorot(key, shape):
    fan_in, fan_out = shape
    limit = jnp.sqrt(6.0 / (fan_in + fan_out))
    return jax.random.uniform(key, shape, jnp.float32, -limit, limit)


if __name__ == "__main__":
    # Small deterministic graph: 200 nodes (pads to 256 -> 2x2 grid, exercises
    # the K accumulation path), 8 input features, hidden=16, classes=2.
    N, F_IN, HID, N_CLS = 200, 8, 16, 2

    key = jax.random.PRNGKey(0)
    k_x, k_w1, k_b1, k_w2, k_b2 = jax.random.split(key, 5)

    x = jax.random.normal(k_x, (N, F_IN), jnp.float32)            # data.x
    ring_src = jnp.arange(N, dtype=jnp.int32)
    ring_dst = (ring_src + 1) % N
    chord_dst = (ring_src + 7) % N
    edge_index = jnp.stack(                                        # data.edge_index
        [jnp.concatenate([ring_src, ring_dst, ring_src, chord_dst]),
         jnp.concatenate([ring_dst, ring_src, chord_dst, ring_src])], axis=0)

    w1 = glorot(k_w1, (F_IN, HID))
    b1 = 0.1 * jax.random.normal(k_b1, (1, HID), jnp.float32)
    w2 = glorot(k_w2, (HID, N_CLS))
    b2 = 0.1 * jax.random.normal(k_b2, (1, N_CLS), jnp.float32)

    ahat = build_ahat(edge_index, N)

    out = gnn_forward(ahat, x, w1, b1, w2, b2)
    jax.block_until_ready(out)

    # f32 plain-JAX reference (eval-mode dropout == identity).
    def ref_forward(ahat, x, w1, b1, w2, b2):
        h = jnp.maximum(ahat @ (x @ w1) + b1, 0.0)
        o = ahat @ (h @ w2) + b2
        return jax.nn.log_softmax(o, axis=-1)

    ref = ref_forward(ahat, x, w1, b1, w2, b2)

    assert out.shape == (N, N_CLS)
    # rows of log_softmax must exp-sum to 1
    assert bool(jnp.allclose(jnp.sum(jnp.exp(out), axis=1), 1.0, atol=1e-4))
    # matches the f32 reference within bf16 streaming tolerance
    assert bool(jnp.allclose(out, ref, atol=5e-2, rtol=5e-2))
    print("KERNEL_OK")
</pallas_src>

<mosaic_0001>
module attributes {stable_mosaic.version = 11 : i64} {
  func.func @xw_kernel(%arg0: i32, %arg1: memref<128x8xbf16, #tpu.memory_space<vmem>>, %arg2: memref<8x16xbf16, #tpu.memory_space<vmem>>, %arg3: memref<128x16xbf16, #tpu.memory_space<vmem>>) attributes {dimension_semantics = [#tpu.dimension_semantics<parallel>], iteration_bounds = array<i64: 2>, scalar_prefetch = 0 : i64, scratch_operands = 0 : i64, tpu.core_type = #tpu.core_type<tc>, window_params = [{transform_indices = @transform_0, window_bounds = array<i64: 128, 8>}, {pipeline_mode = #tpu.pipeline_mode<synchronous>, transform_indices = @transform_1, window_bounds = array<i64: 8, 16>}, {transform_indices = @transform_2, window_bounds = array<i64: 128, 16>}]} {
    %c0 = arith.constant 0 : index
    %c0_0 = arith.constant 0 : index
    %0 = vector.load %arg1[%c0, %c0_0] : memref<128x8xbf16, #tpu.memory_space<vmem>>, vector<128x8xbf16>
    %c0_1 = arith.constant 0 : index
    %c0_2 = arith.constant 0 : index
    %1 = vector.load %arg2[%c0_1, %c0_2] : memref<8x16xbf16, #tpu.memory_space<vmem>>, vector<8x16xbf16>
    %cst = arith.constant dense<0.000000e+00> : vector<128x16xf32>
    %2 = tpu.matmul %0, %1, %cst {dimension_numbers = #tpu.dot_dimension_numbers<[1], [0], [0], [1], [0, 0, 1, 1], [], []>} : vector<128x8xbf16>, vector<8x16xbf16>, vector<128x16xf32> -> vector<128x16xf32>
    %3 = arith.truncf %2 : vector<128x16xf32> to vector<128x16xbf16>
    %c0_3 = arith.constant 0 : index
    %c0_4 = arith.constant 0 : index
    %4 = vector.load %arg3[%c0_3, %c0_4] : memref<128x16xbf16, #tpu.memory_space<vmem>>, vector<128x16xbf16>
    tpu.vector_store %arg3[%c0_3, %c0_4], %3 {strides = array<i32>} : memref<128x16xbf16, #tpu.memory_space<vmem>>, vector<128x16xbf16>,
    return
  }
  func.func @transform_0(%arg0: i32) -> (i32, i32) {
    %c0_i32 = arith.constant 0 : i32
    %c0_i32_0 = arith.constant 0 : i32
    return %arg0, %c0_i32 : i32, i32
  }
  func.func @transform_1(%arg0: i32) -> (i32, i32) {
    %c0_i32 = arith.constant 0 : i32
    %c0_i32_0 = arith.constant 0 : i32
    %c0_i32_1 = arith.constant 0 : i32
    return %c0_i32, %c0_i32_0 : i32, i32
  }
  func.func @transform_2(%arg0: i32) -> (i32, i32) {
    %c0_i32 = arith.constant 0 : i32
    %c0_i32_0 = arith.constant 0 : i32
    return %arg0, %c0_i32 : i32, i32
  }
}

</mosaic_0001>

<llo_original>
// kernel: tpu_custom_call.1
$region0: #{tpu_custom_call.1}
  #allocation0 [shape = 'u32[]', space=smem, size = 0x4, offset = 0x4, fixed_abs, tag = 'smem constant byte address 0x4 - core index']
  #allocation1 [shape = 'u32[144,128]{1,0:T(1,128)}', space=vmem, size = 0x12000, scoped, tag = 'internal scratch']
  %s0 = inlined_call_operand.vmem [shape: bf16[256,8], index: 0, kind: input, shape index: {}]
  %s1 = inlined_call_operand.vmem [shape: bf16[8,16], index: 1, kind: input, shape index: {}]
  %s2 = inlined_call_operand.vmem [shape: bf16[256,16], index: 2, kind: output, shape index: {}]
  %s3 = sld [smem:[#allocation0]]
  $region41: #{tpu_custom_call.1} parent=0
    _
  %s5 = ssub.s32 1, %s3
  %s6 = scalar_select 0, %s5, %s3
  loop: start=0, step=1, limit=4
  $region2: #{tpu_custom_call.1} parent=0 // loop_pre_header
    _
  $region3: #{tpu_custom_call.1} parent=0 // loop_header
    %s8 = sphi 0, %s12
    %p9 = scmp.ge.s32.totalorder %s8, 4
    %s18 = sphi 0, %s20
    %s21 = sphi 0, %s18
    %s22 = sphi 0, %s21
    %s38 = sphi 0, %s22
    %s42 = sphi 0, %s42
    %s44 = sphi 0, %s42
    %s45 = sphi 0, %s44
    %s59 = sphi 0, %s45
    %s65 = sphi 0, %s67
    %s68 = sphi 0, %s65
    %s69 = sphi 0, %s68
    %s85 = sphi 0, %s69
  $region4: #{tpu_custom_call.1} parent=0 // loop_header_branch
    %11 = sbr.rel (%p9) target = $region8
  $region5: #{tpu_custom_call.1} parent=0 // loop_body
    %s13 = ssub.s32 %s8, 1
    %s14 = ssub.s32 %s8, 2
    %s15 = sadd.s32 %s8, 1
    %s16 = ssub.s32 %s8, %s15
    %p17 = scmp.eq.s32.totalorder %s16, 0
    %s19 = sadd.s32 %s18, 1
    %s20 = scalar_select %p17, %s18, %s19
    %p23 = pneg %p17
    %p24 = scmp.eq.s32.totalorder %s8, 1
    %p25 = por %p23, %p24
    %p26 = scmp.ne.s32.totalorder %s18, %s21
    %p27 = scmp.eq.s32.totalorder %s8, 0
    %p28 = por %p26, %p27
    %p29 = scmp.ne.s32.totalorder %s18, %s21
    %p30 = scmp.eq.s32.totalorder %s13, 1
    %p31 = por %p29, %p30
    %p32 = scmp.ne.s32.totalorder %s21, %s22
    %p33 = scmp.eq.s32.totalorder %s13, 0
    %p34 = por %p32, %p33
    %p35 = scmp.ne.s32.totalorder %s21, %s22
    %p36 = scmp.eq.s32.totalorder %s14, 1
    %p37 = por %p35, %p36
    %p39 = scmp.ne.s32.totalorder %s22, %s38
    %p40 = scmp.eq.s32.totalorder %s14, 0
    %p41 = por %p39, %p40
    %s43 = sadd.s32 %s42, 1
    %p46 = scmp.eq.s32.totalorder %s8, 1
    %p47 = scmp.ne.s32.totalorder %s42, %s44
    %p48 = scmp.eq.s32.totalorder %s8, 0
    %p49 = por %p47, %p48
    %p50 = scmp.ne.s32.totalorder %s42, %s44
    %p51 = scmp.eq.s32.totalorder %s13, 1
    %p52 = por %p50, %p51
    %p53 = scmp.ne.s32.totalorder %s44, %s45
    %p54 = scmp.eq.s32.totalorder %s13, 0
    %p55 = por %p53, %p54
    %p56 = scmp.ne.s32.totalorder %s44, %s45
    %p57 = scmp.eq.s32.totalorder %s14, 1
    %p58 = por %p56, %p57
    %p60 = scmp.ne.s32.totalorder %s45, %s59
    %p61 = scmp.eq.s32.totalorder %s14, 0
    %p62 = por %p60, %p61
    %s63 = ssub.s32 %s8, %s15
    %p64 = scmp.eq.s32.totalorder %s63, 0
    %s66 = sadd.s32 %s65, 1
    %s67 = scalar_select %p64, %s65, %s66
    %p70 = pneg %p64
    %p71 = scmp.eq.s32.totalorder %s8, 1
    %p72 = por %p70, %p71
    %p73 = scmp.ne.s32.totalorder %s65, %s68
    %p74 = scmp.eq.s32.totalorder %s8, 0
    %p75 = por %p73, %p74
    %p76 = scmp.ne.s32.totalorder %s65, %s68
    %p77 = scmp.eq.s32.totalorder %s13, 1
    %p78 = por %p76, %p77
    %p79 = scmp.ne.s32.totalorder %s68, %s69
    %p80 = scmp.eq.s32.totalorder %s13, 0
    %p81 = por %p79, %p80
    %p82 = scmp.ne.s32.totalorder %s68, %s69
    %p83 = scmp.eq.s32.totalorder %s14, 1
    %p84 = por %p82, %p83
    %p86 = scmp.ne.s32.totalorder %s69, %s85
    %p87 = scmp.eq.s32.totalorder %s14, 0
    %p88 = por %p86, %p87
    %p89 = scmp.le.s32.totalorder 1, %s8
    %p90 = scmp.lt.s32.totalorder %s8, 3
    %p91 = pnand %p89, %p90
    %p92 = pneg %p91
    // Predicated region
    $region9: #{tpu_custom_call.1} parent=5 // pred_check
      _
    $region10: #{tpu_custom_call.1} parent=5 // pred_check_branch
      %94 = sbr.rel (%p91) target = $region12
    $region11: #{tpu_custom_call.1} parent=5 // pred_region
      %s95 = ssub.s32 %s8, 1
      // Predicated region
      $region13: #{tpu_custom_call.1} parent=11 // pred_check
        %p96 = pneg %p55
      $region14: #{tpu_custom_call.1} parent=11 // pred_check_branch
        %98 = sbr.rel (%p96) target = $region16
      $region15: #{tpu_custom_call.1} parent=11 // pred_region
        _
      $region16: #{tpu_custom_call.1} parent=11 // pred_fallthru
        _
    $region12: #{tpu_custom_call.1} parent=5 // pred_fallthru
      _
    %p99 = scmp.lt.s32.totalorder %s8, 2
    // Predicated region
    $region17: #{tpu_custom_call.1} parent=5 // pred_check
      %p100 = pneg %p99
    $region18: #{tpu_custom_call.1} parent=5 // pred_check_branch
      %102 = sbr.rel (%p100) target = $region20
    $region19: #{tpu_custom_call.1} parent=5 // pred_region
      // Predicated region
      $region21: #{tpu_custom_call.1} parent=19 // pred_check
        %p103 = pneg %p28
      $region22: #{tpu_custom_call.1} parent=19 // pred_check_branch
        %105 = sbr.rel (%p103) target = $region24
      $region23: #{tpu_custom_call.1} parent=19 // pred_region
        %s106 = smul.u32 16, %s8
        %p107 = scmp.lt.s32.totalorder %s106, 31
        %s108 = scalar_select %p107, %s106, 31
        %s109 = smul.addr %s108, 4
        %s110 = scalar_lea.vmem %s0, %s109
        %s111 = smul.u32 16, %s8
      $region24: #{tpu_custom_call.1} parent=19 // pred_fallthru
        _
    $region20: #{tpu_custom_call.1} parent=5 // pred_fallthru
      _
    %p112 = scmp.le.s32.totalorder 1, %s8
    %p113 = scmp.lt.s32.totalorder %s8, 3
    %p114 = pnand %p112, %p113
    %p115 = pneg %p114
    // Predicated region
    $region25: #{tpu_custom_call.1} parent=5 // pred_check
      _
    $region26: #{tpu_custom_call.1} parent=5 // pred_check_branch
      %117 = sbr.rel (%p114) target = $region28
    $region27: #{tpu_custom_call.1} parent=5 // pred_region
      %s118 = ssub.s32 %s8, 1
      %s119 = smul.u32 16, %s13
      %p120 = scmp.lt.s32.totalorder %s119, 31
      %s121 = scalar_select %p120, %s119, 31
      %s122 = smul.addr %s121, 4
      %s123 = scalar_lea.vmem %s0, %s122
      %p124 = pneg %p34
      %p125 = pneg %p31
      %p126 = pneg %p55
      %p127 = pneg %p52
      %p128 = pneg %p81
      %p129 = pneg %p78
      %s130 = smul.u32 16, %s13
      %p131 = scmp.lt.s32.totalorder %s130, 31
      %s132 = scalar_select %p131, %s130, 31
      %s133 = smul.addr %s132, 4
      %s134 = scalar_lea.vmem %s2, %s133
      %s135 = smul.u32 16, %s13
      %p136 = scmp.lt.s32.totalorder %s135, 31
      %s137 = scalar_select %p136, %s135, 31
      %s138 = smul.addr %s137, 4
      %s139 = scalar_lea.vmem %s0, %s138
      %s140 = smul.u32 16, %s13
      %s141 = smul.u32 16, %s13
      %p142 = scmp.lt.s32.totalorder %s141, 31
      %s143 = scalar_select %p142, %s141, 31
      %s144 = smul.addr %s143, 4
      %s145 = scalar_lea.vmem %s2, %s144
      %s146 = smul.u32 16, %s13
      %v148 = vld [vmem:[%s139] sm:$0xf]
      %v149 = vld [vmem:[%s139 + $0x4] sm:$0xf]
      %v150 = vld [vmem:[%s139 + $0x8] sm:$0xf]
      %v151 = vld [vmem:[%s139 + $0xc] sm:$0xf]
      %v152 = vld [vmem:[%s139 + $0x10] sm:$0xf]
      %v153 = vld [vmem:[%s139 + $0x14] sm:$0xf]
      %v154 = vld [vmem:[%s139 + $0x18] sm:$0xf]
      %v155 = vld [vmem:[%s139 + $0x1c] sm:$0xf]
      %v156 = vld [vmem:[%s139 + $0x20] sm:$0xf]
      %v157 = vld [vmem:[%s139 + $0x24] sm:$0xf]
      %v158 = vld [vmem:[%s139 + $0x28] sm:$0xf]
      %v159 = vld [vmem:[%s139 + $0x2c] sm:$0xf]
      %v160 = vld [vmem:[%s139 + $0x30] sm:$0xf]
      %v161 = vld [vmem:[%s139 + $0x34] sm:$0xf]
      %v162 = vld [vmem:[%s139 + $0x38] sm:$0xf]
      %v163 = vld [vmem:[%s139 + $0x3c] sm:$0xf]
      %v164 = vld [vmem:[%s1] sm:$0xf]
      %v181 = vunpack.c.l.b16 %v148
      %v182 = vunpack.c.l.b16 %v149
      %v183 = vunpack.c.l.b16 %v150
      %v184 = vunpack.c.l.b16 %v151
      %v185 = vunpack.c.l.b16 %v152
      %v186 = vunpack.c.l.b16 %v153
      %v187 = vunpack.c.l.b16 %v154
      %v188 = vunpack.c.l.b16 %v155
      %v189 = vunpack.c.l.b16 %v156
      %v190 = vunpack.c.l.b16 %v157
      %v191 = vunpack.c.l.b16 %v158
      %v192 = vunpack.c.l.b16 %v159
      %v193 = vunpack.c.l.b16 %v160
      %v194 = vunpack.c.l.b16 %v161
      %v195 = vunpack.c.l.b16 %v162
      %v196 = vunpack.c.l.b16 %v163
      %v197 = vpack.c.b16 %v182, %v181
      %v198 = vpack.c.b16 %v184, %v183
      %v199 = vpack.c.b16 %v186, %v185
      %v200 = vpack.c.b16 %v188, %v187
      %v201 = vpack.c.b16 %v190, %v189
      %v202 = vpack.c.b16 %v192, %v191
      %v203 = vpack.c.b16 %v194, %v193
      %v204 = vpack.c.b16 %v196, %v195
      %vm205 = vcmask 64512
      %v207 = vsel %vm205, %v197, 0
      %v210 = vsel %vm205, %v198, 0
      %v213 = vsel %vm205, %v199, 0
      %v216 = vsel %vm205, %v200, 0
      %v219 = vsel %vm205, %v201, 0
      %v222 = vsel %vm205, %v202, 0
      %v225 = vsel %vm205, %v203, 0
      %v228 = vsel %vm205, %v204, 0
      %vm230 = vcmask 1043456
      %v232 = vsel %vm230, %v164, 0
      %234 = vmatprep.subr.bf16.mxu0 0
      %235 = vmatpush1.bf16.msra.mxu0 %v232
      %236 = vmatprep.subr.bf16.mxu0 0
      %237 = vmatpush1.bf16.msra.mxu0 0
      %238 = vmatprep.subr.bf16.mxu0 0
      %239 = vmatpush1.bf16.msra.mxu0 0
      %240 = vmatprep.subr.bf16.mxu0 0
      %241 = vmatpush1.bf16.msra.mxu0 0
      %242 = vmatprep.subr.bf16.mxu0 0
      %243 = vmatpush1.bf16.msra.mxu0 0
      %244 = vmatprep.subr.bf16.mxu0 0
      %245 = vmatpush1.bf16.msra.mxu0 0
      %246 = vmatprep.subr.bf16.mxu0 0
      %247 = vmatpush1.bf16.msra.mxu0 0
      %248 = vmatprep.subr.bf16.mxu0 0
      %249 = vmatpush1.bf16.msra.mxu0 0
      %250 = vmatprep.subr.bf16.mxu0 0
      %251 = vmatpush1.bf16.msra.mxu0 0
      %252 = vmatprep.subr.bf16.mxu0 0
      %253 = vmatpush1.bf16.msra.mxu0 0
      %254 = vmatprep.subr.bf16.mxu0 0
      %255 = vmatpush1.bf16.msra.mxu0 0
      %256 = vmatprep.subr.bf16.mxu0 0
      %257 = vmatpush1.bf16.msra.mxu0 0
      %258 = vmatprep.subr.bf16.mxu0 0
      %259 = vmatpush1.bf16.msra.mxu0 0
      %260 = vmatprep.subr.bf16.mxu0 0
      %261 = vmatpush1.bf16.msra.mxu0 0
      %262 = vmatprep.subr.bf16.mxu0 0
      %263 = vmatpush1.bf16.msra.mxu0 0
      %264 = vmatprep.subr.bf16.mxu0 0
      %265 = vmatpush1.bf16.msra.mxu0 0
      %266 = vmatprep.mubr.bf16.mxu0 0
      %267 = vmatmul.mubr.bf16.gmra.mrb[0].mxu0 %v207
      %v268 = vpop.f32.mrb[0].mxu0
      %v269 = vadd.f32 0.0, %v268
      %v270 = vpop.f32.mrb[0].mxu0
      %v271 = vpop.f32.mrb[0].mxu0
      %v272 = vadd.f32 0.0, %v271
      %v273 = vpop.f32.mrb[0].mxu0
      %274 = vmatprep.mubr.bf16.mxu0 0
      %275 = vmatmul.mubr.bf16.gmra.mrb[0].mxu0 %v210
      %v276 = vpop.f32.mrb[0].mxu0
      %v277 = vadd.f32 0.0, %v276
      %v278 = vpop.f32.mrb[0].mxu0
      %v279 = vpop.f32.mrb[0].mxu0
      %v280 = vadd.f32 0.0, %v279
      %v281 = vpop.f32.mrb[0].mxu0
      %282 = vmatprep.mubr.bf16.mxu0 0
      %283 = vmatmul.mubr.bf16.gmra.mrb[0].mxu0 %v213
      %v284 = vpop.f32.mrb[0].mxu0
      %v285 = vadd.f32 0.0, %v284
      %v286 = vpop.f32.mrb[0].mxu0
      %v287 = vpop.f32.mrb[0].mxu0
      %v288 = vadd.f32 0.0, %v287
      %v289 = vpop.f32.mrb[0].mxu0
      %290 = vmatprep.mubr.bf16.mxu0 0
      %291 = vmatmul.mubr.bf16.gmra.mrb[0].mxu0 %v216
      %v292 = vpop.f32.mrb[0].mxu0
      %v293 = vadd.f32 0.0, %v292
      %v294 = vpop.f32.mrb[0].mxu0
      %v295 = vpop.f32.mrb[0].mxu0
      %v296 = vadd.f32 0.0, %v295
      %v297 = vpop.f32.mrb[0].mxu0
      %298 = vmatprep.mubr.bf16.mxu0 0
      %299 = vmatmul.mubr.bf16.gmra.mrb[0].mxu0 %v219
      %v300 = vpop.f32.mrb[0].mxu0
      %v301 = vadd.f32 0.0, %v300
      %v302 = vpop.f32.mrb[0].mxu0
      %v303 = vpop.f32.mrb[0].mxu0
      %v304 = vadd.f32 0.0, %v303
      %v305 = vpop.f32.mrb[0].mxu0
      %306 = vmatprep.mubr.bf16.mxu0 0
      %307 = vmatmul.mubr.bf16.gmra.mrb[0].mxu0 %v222
      %v308 = vpop.f32.mrb[0].mxu0
      %v309 = vadd.f32 0.0, %v308
      %v310 = vpop.f32.mrb[0].mxu0
      %v311 = vpop.f32.mrb[0].mxu0
      %v312 = vadd.f32 0.0, %v311
      %v313 = vpop.f32.mrb[0].mxu0
      %314 = vmatprep.mubr.bf16.mxu0 0
      %315 = vmatmul.mubr.bf16.gmra.mrb[0].mxu0 %v225
      %v316 = vpop.f32.mrb[0].mxu0
      %v317 = vadd.f32 0.0, %v316
      %v318 = vpop.f32.mrb[0].mxu0
      %v319 = vpop.f32.mrb[0].mxu0
      %v320 = vadd.f32 0.0, %v319
      %v321 = vpop.f32.mrb[0].mxu0
      %322 = vmatprep.mubr.bf16.mxu0 0
      %323 = vmatmul.mubr.bf16.gmra.mrb[0].mxu0 %v228
      %v324 = vpop.f32.mrb[0].mxu0
      %v325 = vadd.f32 0.0, %v324
      %v326 = vpop.f32.mrb[0].mxu0
      %v327 = vpop.f32.mrb[0].mxu0
      %v328 = vadd.f32 0.0, %v327
      %v329 = vpop.f32.mrb[0].mxu0
      %330 = vdwg.mxu0
      %v331 = vpack.c.bf16 %v272, %v269
      %v332 = vpack.c.bf16 %v280, %v277
      %v333 = vpack.c.bf16 %v288, %v285
      %v334 = vpack.c.bf16 %v296, %v293
      %v335 = vpack.c.bf16 %v304, %v301
      %v336 = vpack.c.bf16 %v312, %v309
      %v337 = vpack.c.bf16 %v320, %v317
      %v338 = vpack.c.bf16 %v328, %v325
      %v347 = vunpack.c.l.b16 %v331
      %v348 = vunpack.c.h.b16 %v331
      %v349 = vunpack.c.l.b16 %v332
      %v350 = vunpack.c.h.b16 %v332
      %v351 = vunpack.c.l.b16 %v333
      %v352 = vunpack.c.h.b16 %v333
      %v353 = vunpack.c.l.b16 %v334
      %v354 = vunpack.c.h.b16 %v334
      %v355 = vunpack.c.l.b16 %v335
      %v356 = vunpack.c.h.b16 %v335
      %v357 = vunpack.c.l.b16 %v336
      %v358 = vunpack.c.h.b16 %v336
      %v359 = vunpack.c.l.b16 %v337
      %v360 = vunpack.c.h.b16 %v337
      %v361 = vunpack.c.l.b16 %v338
      %v362 = vunpack.c.h.b16 %v338
      %v363 = vpack.c.b16 %v347, %v347
      %v364 = vpack.c.b16 %v348, %v348
      %v365 = vpack.c.b16 %v349, %v349
      %v366 = vpack.c.b16 %v350, %v350
      %v367 = vpack.c.b16 %v351, %v351
      %v368 = vpack.c.b16 %v352, %v352
      %v369 = vpack.c.b16 %v353, %v353
      %v370 = vpack.c.b16 %v354, %v354
      %v371 = vpack.c.b16 %v355, %v355
      %v372 = vpack.c.b16 %v356, %v356
      %v373 = vpack.c.b16 %v357, %v357
      %v374 = vpack.c.b16 %v358, %v358
      %v375 = vpack.c.b16 %v359, %v359
      %v376 = vpack.c.b16 %v360, %v360
      %v377 = vpack.c.b16 %v361, %v361
      %v378 = vpack.c.b16 %v362, %v362
      %vm395 = vcmask 125952
      %396 = vst.msk [vmem:[%s145] sm:$0xf] %vm395, %v363
      %397 = vst.msk [vmem:[%s145 + $0x4] sm:$0xf] %vm395, %v364
      %398 = vst.msk [vmem:[%s145 + $0x8] sm:$0xf] %vm395, %v365
      %399 = vst.msk [vmem:[%s145 + $0xc] sm:$0xf] %vm395, %v366
      %400 = vst.msk [vmem:[%s145 + $0x10] sm:$0xf] %vm395, %v367
      %401 = vst.msk [vmem:[%s145 + $0x14] sm:$0xf] %vm395, %v368
      %402 = vst.msk [vmem:[%s145 + $0x18] sm:$0xf] %vm395, %v369
      %403 = vst.msk [vmem:[%s145 + $0x1c] sm:$0xf] %vm395, %v370
      %404 = vst.msk [vmem:[%s145 + $0x20] sm:$0xf] %vm395, %v371
      %405 = vst.msk [vmem:[%s145 + $0x24] sm:$0xf] %vm395, %v372
      %406 = vst.msk [vmem:[%s145 + $0x28] sm:$0xf] %vm395, %v373
      %407 = vst.msk [vmem:[%s145 + $0x2c] sm:$0xf] %vm395, %v374
      %408 = vst.msk [vmem:[%s145 + $0x30] sm:$0xf] %vm395, %v375
      %409 = vst.msk [vmem:[%s145 + $0x34] sm:$0xf] %vm395, %v376
      %410 = vst.msk [vmem:[%s145 + $0x38] sm:$0xf] %vm395, %v377
      %411 = vst.msk [vmem:[%s145 + $0x3c] sm:$0xf] %vm395, %v378
      %s412 = smul.u32 16, %s13
      %p413 = scmp.lt.s32.totalorder %s412, 31
      %s414 = scalar_select %p413, %s412, 31
      %s415 = smul.addr %s414, 4
      %s416 = scalar_lea.vmem %s2, %s415
      // Predicated region
      $region29: #{tpu_custom_call.1} parent=27 // pred_check
        %p417 = pneg %p78
      $region30: #{tpu_custom_call.1} parent=27 // pred_check_branch
        %419 = sbr.rel (%p417) target = $region32
      $region31: #{tpu_custom_call.1} parent=27 // pred_region
        %s420 = smul.u32 16, %s13
      $region32: #{tpu_custom_call.1} parent=27 // pred_fallthru
        _
    $region28: #{tpu_custom_call.1} parent=5 // pred_fallthru
      _
    %p421 = scmp.le.s32.totalorder 2, %s8
    // Predicated region
    $region33: #{tpu_custom_call.1} parent=5 // pred_check
      %p422 = pneg %p421
    $region34: #{tpu_custom_call.1} parent=5 // pred_check_branch
      %424 = sbr.rel (%p422) target = $region36
    $region35: #{tpu_custom_call.1} parent=5 // pred_region
      %s425 = ssub.s32 %s8, 2
      // Predicated region
      $region37: #{tpu_custom_call.1} parent=35 // pred_check
        %p426 = pneg %p84
      $region38: #{tpu_custom_call.1} parent=35 // pred_check_branch
        %428 = sbr.rel (%p426) target = $region40
      $region39: #{tpu_custom_call.1} parent=35 // pred_region
        %s429 = smul.u32 16, %s14
        %p430 = scmp.lt.s32.totalorder %s429, 31
        %s431 = scalar_select %p430, %s429, 31
        %s432 = smul.addr %s431, 4
        %s433 = scalar_lea.vmem %s2, %s432
      $region40: #{tpu_custom_call.1} parent=35 // pred_fallthru
        _
    $region36: #{tpu_custom_call.1} parent=5 // pred_fallthru
      _
  $region6: #{tpu_custom_call.1} parent=0 // loop_footer
    %s12 = sadd.s32 1, %s8
  $region7: #{tpu_custom_call.1} parent=0 // loop_footer_branch
    %7 = sbr.rel target = $region3
  $region8: #{tpu_custom_call.1} parent=0 // loop_exit
    _

</llo_original>
